<compile_context>
chip_gen: v7x
topology: tpu7x:2x2x1
jax: 0.10.0
libtpu: 0.0.40
codegen_flags: <defaults>
</compile_context>

<pallas_src>
import functools

import jax
import jax.numpy as jnp
from jax.experimental import pallas as pl
from jax.experimental.pallas import tpu as pltpu

_LANE = 128
_MIB = 1 << 20


def _vis_reason_head_kernel(x_ref, w1_ref, b1_ref, w2_ref, b2_ref, o_ref, acc_ref,
                            *, inv_hw):
    """Fused global-average-pool + 2-layer MLP head.

    x_ref  : [tB, C, tHW]   current spatial chunk (input dtype)
    w1_ref : [C, hidden]    b1_ref : [1, hidden]
    w2_ref : [hidden, NP]   b2_ref : [1, NP]      (NP = ncls padded to 128 lanes)
    o_ref  : [tB, NP]       logits (f32)
    acc_ref: [tB, C]        f32 spatial-sum accumulator (VMEM scratch)
    """
    hw_id = pl.program_id(1)

    @pl.when(hw_id == 0)
    def _init():
        acc_ref[...] = jnp.zeros_like(acc_ref)

    # Partial spatial sum over the lane axis (XLU reduce; VPU/MXU have huge slack
    # in this HBM-bound kernel, so no need for the VPU-only accumulation variant).
    chunk = x_ref[...].astype(jnp.float32)
    acc_ref[...] += jnp.sum(chunk, axis=-1)

    @pl.when(hw_id == pl.num_programs(1) - 1)
    def _finalize():
        pooled = acc_ref[...] * inv_hw                                     # [tB, C]
        h = jnp.dot(pooled, w1_ref[...], preferred_element_type=jnp.float32)
        h = jnp.maximum(h + b1_ref[...], 0.0)                              # [tB, hidden]
        logits = jnp.dot(h, w2_ref[...], preferred_element_type=jnp.float32)
        o_ref[...] = (logits + b2_ref[...]).astype(o_ref.dtype)


def _vmem_capacity_bytes():
    """Physical VMEM per core; conservative fallback if the query is unavailable."""
    try:
        return int(pltpu.get_tpu_info().vmem_capacity_bytes)
    except Exception:
        return 64 * _MIB  # v7x per-core size; safe lower bound for all generations


def _batch_tile_candidates(B, batch_tile):
    if batch_tile is not None:
        return [batch_tile]
    cands = [t for t in range(8, B + 1, 8) if B % t == 0]
    if B not in cands:
        cands.append(B)  # tiny / odd batches: full extent is always a legal tile

    def pref(t):
        multi_block = 0 if (B // t) >= 2 else 1   # v7x: >=2 blocks on the parallel axis
        oversized = 1 if t > 256 else 0           # keep MXU-row-friendly tiles
        return (multi_block, oversized, -t)       # then largest (fewer grid steps)

    return sorted(cands, key=pref)


def _pick_tiles(B, C, HW, x_itemsize, ncls_pad, usable_vmem, fixed_bytes,
                batch_tile, hw_tile):
    """Choose (t_b, t_hw) deterministically against the VMEM budget.

    Preference: full-HW (fully contiguous) x slabs first, shrinking the batch tile
    before giving up on contiguity; then the largest 128-multiple spatial chunk.
    """
    b_cands = _batch_tile_candidates(B, batch_tile)
    if hw_tile is not None:
        hw_cands = [hw_tile]
    else:
        hw_cands = [HW] + [c for c in (2048, 1024, 512, 256, 128)
                           if c < HW and HW % c == 0]

    def fits(t_b, t_hw):
        x_bytes = 2 * t_b * C * t_hw * x_itemsize                 # double-buffered stream
        out_bytes = 2 * t_b * ncls_pad * 4                        # double-buffered output
        acc_bytes = (-(-t_b // 8) * 8) * (-(-C // _LANE) * _LANE) * 4  # padded scratch
        return fixed_bytes + x_bytes + out_bytes + acc_bytes <= usable_vmem

    for t_hw in hw_cands:
        for t_b in b_cands:
            if fits(t_b, t_hw):
                return t_b, t_hw
    return min(b_cands), hw_cands[-1]   # nothing fits the budget: smallest tiles


def region_vis_reason_header(x_nchw, w1, b1, w2, b2, *, batch_tile=None, hw_tile=None):
    """Eval-path forward of RegionVisReasonHeader.

    x_nchw: [B, C, H, W]  (PyTorch NCHW layout, any float dtype; bf16 halves HBM traffic)
    w1:     [C, hidden]      b1: [hidden]
    w2:     [hidden, ncls]   b2: [ncls]
    returns vis_cls logits [B, ncls] (float32)
    """
    B, C, H, W = x_nchw.shape
    HW = H * W
    hidden = w1.shape[1]
    ncls = w2.shape[1]

    # Contiguous NCHW view -> [B, C, HW]; a free metadata reshape (no HBM relayout).
    x = x_nchw.reshape(B, C, HW)

    # Pad classes to a full 128-lane multiple -> unmasked full-lane output stores.
    ncls_pad = -(-ncls // _LANE) * _LANE
    if ncls_pad != ncls:
        w2p = jnp.pad(w2, ((0, 0), (0, ncls_pad - ncls)))
        b2p = jnp.pad(b2, ((0, ncls_pad - ncls),))
    else:
        w2p, b2p = w2, b2
    b1_2d = b1.reshape(1, hidden)
    b2_2d = b2p.reshape(1, ncls_pad)

    def nbytes(a):
        return a.size * a.dtype.itemsize

    # Generation-aware budget: half of physical VMEM, capped at 64 MiB.
    cap = _vmem_capacity_bytes()
    usable = min(cap // 2, 64 * _MIB)

    # Weights/biases have constant index maps but are still allocated double-buffered
    # by the default pipeliner; charge 2x plus headroom for compiler-internal scratch.
    weight_bytes = nbytes(w1) + nbytes(b1_2d) + nbytes(w2p) + nbytes(b2_2d)
    fixed_bytes = 2 * weight_bytes + 2 * _MIB

    t_b, t_hw = _pick_tiles(B, C, HW, x.dtype.itemsize, ncls_pad, usable,
                            fixed_bytes, batch_tile, hw_tile)
    assert B % t_b == 0 and (t_b % 8 == 0 or t_b == B), "bad batch tile"
    assert HW % t_hw == 0 and (t_hw % _LANE == 0 or t_hw == HW), "bad spatial tile"
    grid = (B // t_b, HW // t_hw)

    # Explicit scoped-VMEM limit sized to what this call actually allocates.
    x_tile_bytes = t_b * C * t_hw * x.dtype.itemsize
    out_tile_bytes = t_b * ncls_pad * 4
    acc_bytes = (-(-t_b // 8) * 8) * (-(-C // _LANE) * _LANE) * 4
    needed = 2 * (x_tile_bytes + out_tile_bytes) + 2 * weight_bytes + acc_bytes
    vmem_limit = int(min(max(needed + needed // 4 + 2 * _MIB, 32 * _MIB),
                         max(cap - 8 * _MIB, 32 * _MIB)))

    kernel = functools.partial(_vis_reason_head_kernel, inv_hw=1.0 / float(HW))

    flops = int(B * C * HW + 2 * B * C * hidden + 2 * B * hidden * ncls_pad)
    bytes_accessed = int(nbytes(x) + weight_bytes + B * ncls_pad * 4)

    out_padded = pl.pallas_call(
        kernel,
        out_shape=jax.ShapeDtypeStruct((B, ncls_pad), jnp.float32),
        grid_spec=pltpu.PrefetchScalarGridSpec(
            num_scalar_prefetch=0,
            grid=grid,
            in_specs=[
                # Streamed input (default double buffering already hides DMA here).
                pl.BlockSpec((t_b, C, t_hw), lambda b, s: (b, 0, s)),
                # Weights / biases: constant block index -> DMA'd once, kept resident.
                pl.BlockSpec((C, hidden), lambda b, s: (0, 0)),
                pl.BlockSpec((1, hidden), lambda b, s: (0, 0)),
                pl.BlockSpec((hidden, ncls_pad), lambda b, s: (0, 0)),
                pl.BlockSpec((1, ncls_pad), lambda b, s: (0, 0)),
            ],
            out_specs=pl.BlockSpec((t_b, ncls_pad), lambda b, s: (b, 0)),
            scratch_shapes=[pltpu.VMEM((t_b, C), jnp.float32)],
        ),
        compiler_params=pltpu.CompilerParams(
            # Batch axis shards across TensorCores (v7x megacore); the spatial
            # reduction axis stays "arbitrary" and last.
            dimension_semantics=("parallel", "arbitrary"),
            vmem_limit_bytes=vmem_limit,
        ),
        cost_estimate=pl.CostEstimate(
            flops=flops, transcendentals=0, bytes_accessed=bytes_accessed),
    )(x, w1, b1_2d, w2p, b2_2d)

    return out_padded[:, :ncls]


def _reference(x_nchw, w1, b1, w2, b2):
    pooled = jnp.mean(x_nchw.astype(jnp.float32), axis=(2, 3))     # [B, C]
    h = jnp.maximum(pooled @ w1 + b1, 0.0)
    return h @ w2 + b2


if __name__ == "__main__":
    key = jax.random.PRNGKey(0)
    k_x, k_w1, k_b1, k_w2, k_b2 = jax.random.split(key, 5)

    B, C, H, W = 2, 32, 16, 16
    hidden, num_classes = 64, 8

    x = jax.random.normal(k_x, (B, C, H, W), dtype=jnp.float32)
    w1 = jax.random.normal(k_w1, (C, hidden), dtype=jnp.float32) * 0.05
    b1 = jax.random.normal(k_b1, (hidden,), dtype=jnp.float32) * 0.01
    w2 = jax.random.normal(k_w2, (hidden, num_classes), dtype=jnp.float32) * 0.05
    b2 = jax.random.normal(k_b2, (num_classes,), dtype=jnp.float32) * 0.01

    ref = _reference(x, w1, b1, w2, b2)

    # Auto-picked tiles (full-HW contiguous slab path).
    vis_cls = region_vis_reason_header(x, w1, b1, w2, b2)
    jax.block_until_ready(vis_cls)
    assert vis_cls.shape == (B, num_classes)
    assert jnp.allclose(vis_cls, ref, atol=1e-4, rtol=1e-4), "mismatch (auto tiles)"

    # Force a multi-step spatial reduction to exercise the pipelined accumulator path.
    vis_cls2 = region_vis_reason_header(x, w1, b1, w2, b2, hw_tile=128)
    jax.block_until_ready(vis_cls2)
    assert jnp.allclose(vis_cls2, ref, atol=1e-4, rtol=1e-4), "mismatch (hw_tile=128)"

    # bf16 x stream (half the HBM traffic); compare against a reference fed the
    # same bf16-cast input so only accumulation order differs.
    x_bf16 = x.astype(jnp.bfloat16)
    ref_bf16 = _reference(x_bf16, w1, b1, w2, b2)
    vis_cls3 = region_vis_reason_header(x_bf16, w1, b1, w2, b2)
    jax.block_until_ready(vis_cls3)
    assert jnp.allclose(vis_cls3, ref_bf16, atol=1e-3, rtol=1e-3), "mismatch (bf16 x)"

    print("KERNEL_OK")
</pallas_src>

<mosaic_0001>
module attributes {stable_mosaic.version = 11 : i64} {
  func.func @_vis_reason_head_kernel(%arg0: i32, %arg1: i32, %arg2: memref<2x32x256xf32, #tpu.memory_space<vmem>>, %arg3: memref<32x64xf32, #tpu.memory_space<vmem>>, %arg4: memref<1x64xf32, #tpu.memory_space<vmem>>, %arg5: memref<64x128xf32, #tpu.memory_space<vmem>>, %arg6: memref<1x128xf32, #tpu.memory_space<vmem>>, %arg7: memref<2x128xf32, #tpu.memory_space<vmem>>, %arg8: memref<2x32xf32, #tpu.memory_space<vmem>>) attributes {dimension_semantics = [#tpu.dimension_semantics<parallel>, #tpu.dimension_semantics<arbitrary>], iteration_bounds = array<i64: 1, 1>, scalar_prefetch = 0 : i64, scratch_operands = 1 : i64, tpu.core_type = #tpu.core_type<tc>, window_params = [{transform_indices = @transform_0, window_bounds = array<i64: 2, 32, 256>}, {pipeline_mode = #tpu.pipeline_mode<synchronous>, transform_indices = @transform_1, window_bounds = array<i64: 32, 64>}, {pipeline_mode = #tpu.pipeline_mode<synchronous>, transform_indices = @transform_2, window_bounds = array<i64: 1, 64>}, {pipeline_mode = #tpu.pipeline_mode<synchronous>, transform_indices = @transform_3, window_bounds = array<i64: 64, 128>}, {pipeline_mode = #tpu.pipeline_mode<synchronous>, transform_indices = @transform_4, window_bounds = array<i64: 1, 128>}, {transform_indices = @transform_5, window_bounds = array<i64: 2, 128>}]} {
    %c0_i32 = arith.constant 0 : i32
    %0 = arith.cmpi eq, %arg1, %c0_i32 : i32
    %1 = arith.extui %0 : i1 to i32
    %c0_i32_0 = arith.constant 0 : i32
    %2 = arith.cmpi ne, %1, %c0_i32_0 : i32
    scf.if %2 {
      %cst_9 = arith.constant 0.000000e+00 : f32
      %11 = vector.broadcast %cst_9 : f32 to vector<2x32xf32>
      %c0_10 = arith.constant 0 : index
      %c0_11 = arith.constant 0 : index
      %12 = vector.load %arg8[%c0_10, %c0_11] : memref<2x32xf32, #tpu.memory_space<vmem>>, vector<2x32xf32>
      tpu.vector_store %arg8[%c0_10, %c0_11], %11 {strides = array<i32>} : memref<2x32xf32, #tpu.memory_space<vmem>>, vector<2x32xf32>,
    } else {
    }
    %c0 = arith.constant 0 : index
    %c0_1 = arith.constant 0 : index
    %c0_2 = arith.constant 0 : index
    %3 = vector.load %arg2[%c0, %c0_1, %c0_2] : memref<2x32x256xf32, #tpu.memory_space<vmem>>, vector<2x32x256xf32>
    %c0_3 = arith.constant 0 : index
    %c0_4 = arith.constant 0 : index
    %4 = vector.load %arg8[%c0_3, %c0_4] : memref<2x32xf32, #tpu.memory_space<vmem>>, vector<2x32xf32>
    %cst = arith.constant dense<0.000000e+00> : vector<2x32xf32>
    %5 = vector.multi_reduction <add>, %3, %cst [2] : vector<2x32x256xf32> to vector<2x32xf32>
    %6 = arith.addf %4, %5 : vector<2x32xf32>
    %c0_5 = arith.constant 0 : index
    %c0_6 = arith.constant 0 : index
    %7 = vector.load %arg8[%c0_5, %c0_6] : memref<2x32xf32, #tpu.memory_space<vmem>>, vector<2x32xf32>
    tpu.vector_store %arg8[%c0_5, %c0_6], %6 {strides = array<i32>} : memref<2x32xf32, #tpu.memory_space<vmem>>, vector<2x32xf32>,
    %c0_i32_7 = arith.constant 0 : i32
    %8 = arith.cmpi eq, %arg1, %c0_i32_7 : i32
    %9 = arith.extui %8 : i1 to i32
    %c0_i32_8 = arith.constant 0 : i32
    %10 = arith.cmpi ne, %9, %c0_i32_8 : i32
    scf.if %10 {
      %c0_9 = arith.constant 0 : index
      %c0_10 = arith.constant 0 : index
      %11 = vector.load %arg8[%c0_9, %c0_10] : memref<2x32xf32, #tpu.memory_space<vmem>>, vector<2x32xf32>
      %cst_11 = arith.constant 3.906250e-03 : f32
      %12 = vector.broadcast %cst_11 : f32 to vector<2x32xf32>
      %13 = arith.mulf %11, %12 : vector<2x32xf32>
      %c0_12 = arith.constant 0 : index
      %c0_13 = arith.constant 0 : index
      %14 = vector.load %arg3[%c0_12, %c0_13] : memref<32x64xf32, #tpu.memory_space<vmem>>, vector<32x64xf32>
      %cst_14 = arith.constant dense<0.000000e+00> : vector<2x64xf32>
      %15 = tpu.matmul %13, %14, %cst_14 {dimension_numbers = #tpu.dot_dimension_numbers<[1], [0], [0], [1], [0, 0, 1, 1], [], []>} : vector<2x32xf32>, vector<32x64xf32>, vector<2x64xf32> -> vector<2x64xf32>
      %c0_15 = arith.constant 0 : index
      %c0_16 = arith.constant 0 : index
      %16 = vector.load %arg4[%c0_15, %c0_16] : memref<1x64xf32, #tpu.memory_space<vmem>>, vector<1x64xf32>
      %17 = vector.broadcast %16 : vector<1x64xf32> to vector<2x64xf32>
      %18 = arith.addf %15, %17 : vector<2x64xf32>
      %cst_17 = arith.constant 0.000000e+00 : f32
      %19 = vector.broadcast %cst_17 : f32 to vector<2x64xf32>
      %20 = arith.maximumf %18, %19 : vector<2x64xf32>
      %c0_18 = arith.constant 0 : index
      %c0_19 = arith.constant 0 : index
      %21 = vector.load %arg5[%c0_18, %c0_19] : memref<64x128xf32, #tpu.memory_space<vmem>>, vector<64x128xf32>
      %cst_20 = arith.constant dense<0.000000e+00> : vector<2x128xf32>
      %22 = tpu.matmul %20, %21, %cst_20 {dimension_numbers = #tpu.dot_dimension_numbers<[1], [0], [0], [1], [0, 0, 1, 1], [], []>} : vector<2x64xf32>, vector<64x128xf32>, vector<2x128xf32> -> vector<2x128xf32>
      %c0_21 = arith.constant 0 : index
      %c0_22 = arith.constant 0 : index
      %23 = vector.load %arg6[%c0_21, %c0_22] : memref<1x128xf32, #tpu.memory_space<vmem>>, vector<1x128xf32>
      %24 = vector.broadcast %23 : vector<1x128xf32> to vector<2x128xf32>
      %25 = arith.addf %22, %24 : vector<2x128xf32>
      %c0_23 = arith.constant 0 : index
      %c0_24 = arith.constant 0 : index
      %26 = vector.load %arg7[%c0_23, %c0_24] : memref<2x128xf32, #tpu.memory_space<vmem>>, vector<2x128xf32>
      tpu.vector_store %arg7[%c0_23, %c0_24], %25 {strides = array<i32>} : memref<2x128xf32, #tpu.memory_space<vmem>>, vector<2x128xf32>,
    } else {
    }
    return
  }
  func.func @transform_0(%arg0: i32, %arg1: i32) -> (i32, i32, i32) {
    %c0_i32 = arith.constant 0 : i32
    %c0_i32_0 = arith.constant 0 : i32
    return %arg0, %c0_i32, %arg1 : i32, i32, i32
  }
  func.func @transform_1(%arg0: i32, %arg1: i32) -> (i32, i32) {
    %c0_i32 = arith.constant 0 : i32
    %c0_i32_0 = arith.constant 0 : i32
    %c0_i32_1 = arith.constant 0 : i32
    return %c0_i32, %c0_i32_0 : i32, i32
  }
  func.func @transform_2(%arg0: i32, %arg1: i32) -> (i32, i32) {
    %c0_i32 = arith.constant 0 : i32
    %c0_i32_0 = arith.constant 0 : i32
    %c0_i32_1 = arith.constant 0 : i32
    return %c0_i32, %c0_i32_0 : i32, i32
  }
  func.func @transform_3(%arg0: i32, %arg1: i32) -> (i32, i32) {
    %c0_i32 = arith.constant 0 : i32
    %c0_i32_0 = arith.constant 0 : i32
    %c0_i32_1 = arith.constant 0 : i32
    return %c0_i32, %c0_i32_0 : i32, i32
  }
  func.func @transform_4(%arg0: i32, %arg1: i32) -> (i32, i32) {
    %c0_i32 = arith.constant 0 : i32
    %c0_i32_0 = arith.constant 0 : i32
    %c0_i32_1 = arith.constant 0 : i32
    return %c0_i32, %c0_i32_0 : i32, i32
  }
  func.func @transform_5(%arg0: i32, %arg1: i32) -> (i32, i32) {
    %c0_i32 = arith.constant 0 : i32
    %c0_i32_0 = arith.constant 0 : i32
    return %arg0, %c0_i32 : i32, i32
  }
}

</mosaic_0001>

<llo_original>
// kernel: tpu_custom_call.1
$region0: #{tpu_custom_call.1}
  #allocation0 [shape = 'u32[]', space=smem, size = 0x4, offset = 0x4, fixed_abs, tag = 'smem constant byte address 0x4 - core index']
  #allocation1 [shape = 'u32[144,128]{1,0:T(1,128)}', space=vmem, size = 0x12000, scoped, tag = 'internal scratch']
  #allocation2 [shape = 'f32[2,32]{1,0:T(2,128)}', space=vmem, size = 0x400, scoped, tag = 'scratch operand']
  %s0 = inlined_call_operand.hbm [shape: f32[2,32,256], index: 0, kind: input, shape index: {}]
  %s1 = inlined_call_operand.hbm [shape: f32[32,64], index: 1, kind: input, shape index: {}]
  %s2 = inlined_call_operand.vmem [shape: f32[1,64], index: 2, kind: input, shape index: {}]
  %s3 = inlined_call_operand.hbm [shape: f32[64,128], index: 3, kind: input, shape index: {}]
  %s4 = inlined_call_operand.vmem [shape: f32[1,128], index: 4, kind: input, shape index: {}]
  %s5 = inlined_call_operand.hbm [shape: f32[2,128], index: 5, kind: output, shape index: {}]
  %s6 = sld [smem:[#allocation0]]
  $region50: #{tpu_custom_call.1} parent=0
    _
  %s8 = ssub.s32 1, %s6
  %s9 = scalar_select 0, %s8, %s6
  $region1: #{tpu_custom_call.1} parent=0
    #allocation3 [shape = 'u8[65536]{0}', space=vmem, size = 0x10000, scoped, tag = 'input window, operand 0, single buffered']
    #allocation4 [shape = 's32[1]{0}', space=sflag, size = 0x4, scoped, tag = 'scoped memory for tpu_custom_call.1']
    #allocation5 [shape = 's32[1]{0}', space=sflag, size = 0x4, scoped, tag = 'scoped memory for tpu_custom_call.1']
    #allocation6 [shape = 'u8[16384]{0}', space=vmem, size = 0x4000, scoped, tag = 'input window, operand 1, single buffered']
    #allocation7 [shape = 's32[1]{0}', space=sflag, size = 0x4, scoped, tag = 'scoped memory for tpu_custom_call.1']
    #allocation8 [shape = 'u8[32768]{0}', space=vmem, size = 0x8000, scoped, tag = 'input window, operand 3, single buffered']
    #allocation9 [shape = 'u8[1024]{0}', space=vmem, size = 0x400, scoped, tag = 'output window, operand 0, single buffered']
    %10 = vsyncpa [#allocation4], 0
    %11 = vsyncpa [#allocation7], 0
    %12 = vsyncpa [#allocation5], 0
    // Predicated region
    $region2: #{tpu_custom_call.1} parent=1 // pred_check
      _
    $region3: #{tpu_custom_call.1} parent=1 // pred_check_branch
      %14 = sbr.rel (0) target = $region5
    $region4: #{tpu_custom_call.1} parent=1 // pred_region
      %s16 = ssub.s32 2048, 2048
      %17 = vsyncadd [#allocation4], %s16
      %s18 = sshll.u32 [#allocation3], 4
      %s19 = int_to_ptr.vmem [resolvable:$true] %s18
      %24 = dma.hbm_to_vmem [thread:$0]  %s0, 2048, %s19, [#allocation4], 256, 256, 16
    $region5: #{tpu_custom_call.1} parent=1 // pred_fallthru
      _
    // Predicated region
    $region6: #{tpu_custom_call.1} parent=1 // pred_check
      _
    $region7: #{tpu_custom_call.1} parent=1 // pred_check_branch
      %26 = sbr.rel (0) target = $region9
    $region8: #{tpu_custom_call.1} parent=1 // pred_region
      %s28 = ssub.s32 512, 512
      %29 = vsyncadd [#allocation7], %s28
      %s30 = sshll.u32 [#allocation6], 4
      %s31 = int_to_ptr.vmem [resolvable:$true] %s30
      %36 = dma.hbm_to_vmem [thread:$0]  %s1, 512, %s31, [#allocation7], 128, 128, 8
    $region9: #{tpu_custom_call.1} parent=1 // pred_fallthru
      _
    // Predicated region
    $region10: #{tpu_custom_call.1} parent=1 // pred_check
      _
    $region11: #{tpu_custom_call.1} parent=1 // pred_check_branch
      %38 = sbr.rel (0) target = $region13
    $region12: #{tpu_custom_call.1} parent=1 // pred_region
      _
    $region13: #{tpu_custom_call.1} parent=1 // pred_fallthru
      _
    // Predicated region
    $region14: #{tpu_custom_call.1} parent=1 // pred_check
      _
    $region15: #{tpu_custom_call.1} parent=1 // pred_check_branch
      %40 = sbr.rel (0) target = $region17
    $region16: #{tpu_custom_call.1} parent=1 // pred_region
      %s42 = ssub.s32 1024, 1024
      %43 = vsyncadd [#allocation7], %s42
      %s44 = sshll.u32 [#allocation8], 4
      %s45 = int_to_ptr.vmem [resolvable:$true] %s44
      %50 = dma.hbm_to_vmem [thread:$0]  %s3, 1024, %s45, [#allocation7], 128, 128, 8
    $region17: #{tpu_custom_call.1} parent=1 // pred_fallthru
      _
    // Predicated region
    $region18: #{tpu_custom_call.1} parent=1 // pred_check
      _
    $region19: #{tpu_custom_call.1} parent=1 // pred_check_branch
      %52 = sbr.rel (0) target = $region21
    $region20: #{tpu_custom_call.1} parent=1 // pred_region
      _
    $region21: #{tpu_custom_call.1} parent=1 // pred_fallthru
      _
    // Predicated region
    $region22: #{tpu_custom_call.1} parent=1 // pred_check
      _
    $region23: #{tpu_custom_call.1} parent=1 // pred_check_branch
      %54 = sbr.rel (0) target = $region25
    $region24: #{tpu_custom_call.1} parent=1 // pred_region
      %55 = dma.done [#allocation4], 2048
    $region25: #{tpu_custom_call.1} parent=1 // pred_fallthru
      _
    // Predicated region
    $region26: #{tpu_custom_call.1} parent=1 // pred_check
      _
    $region27: #{tpu_custom_call.1} parent=1 // pred_check_branch
      %57 = sbr.rel (0) target = $region29
    $region28: #{tpu_custom_call.1} parent=1 // pred_region
      %58 = dma.done [#allocation7], 512
    $region29: #{tpu_custom_call.1} parent=1 // pred_fallthru
      _
    // Predicated region
    $region30: #{tpu_custom_call.1} parent=1 // pred_check
      _
    $region31: #{tpu_custom_call.1} parent=1 // pred_check_branch
      %60 = sbr.rel (0) target = $region33
    $region32: #{tpu_custom_call.1} parent=1 // pred_region
      %61 = dma.done [#allocation7], 1024
    $region33: #{tpu_custom_call.1} parent=1 // pred_fallthru
      _
    %p62 = scmp.eq.s32.totalorder 0, 0
    // Predicated region
    $region34: #{tpu_custom_call.1} parent=1 // pred_check
      %p63 = pneg %p62
    $region35: #{tpu_custom_call.1} parent=1 // pred_check_branch
      %65 = sbr.rel (%p63) target = $region37
    $region36: #{tpu_custom_call.1} parent=1 // pred_region
      %vm66 = vcmask 254976
      %67 = vst.msk [vmem:[#allocation2] sm:$0x3] %vm66, 0.0
    $region37: #{tpu_custom_call.1} parent=1 // pred_fallthru
      _
    %v68 = vld [vmem:[#allocation3] sm:$0xff]
    %v69 = vld [vmem:[#allocation3 + $0x8] sm:$0xff]
    %v70 = vld [vmem:[#allocation3 + $0x10] sm:$0xff]
    %v71 = vld [vmem:[#allocation3 + $0x18] sm:$0xff]
    %v72 = vld [vmem:[#allocation3 + $0x20] sm:$0xff]
    %v73 = vld [vmem:[#allocation3 + $0x28] sm:$0xff]
    %v74 = vld [vmem:[#allocation3 + $0x30] sm:$0xff]
    %v75 = vld [vmem:[#allocation3 + $0x38] sm:$0xff]
    %v76 = vld [vmem:[#allocation3 + $0x40] sm:$0xff]
    %v77 = vld [vmem:[#allocation3 + $0x48] sm:$0xff]
    %v78 = vld [vmem:[#allocation3 + $0x50] sm:$0xff]
    %v79 = vld [vmem:[#allocation3 + $0x58] sm:$0xff]
    %v80 = vld [vmem:[#allocation3 + $0x60] sm:$0xff]
    %v81 = vld [vmem:[#allocation3 + $0x68] sm:$0xff]
    %v82 = vld [vmem:[#allocation3 + $0x70] sm:$0xff]
    %v83 = vld [vmem:[#allocation3 + $0x78] sm:$0xff]
    %v84 = vld [vmem:[#allocation2] sm:$0x3]
    %v85 = vadd.f32 %v68, %v69
    %86 = vadd.xlane.f32.xlu0 %v85
    %v87 = vpop.xlane.xlu0 %86
    %v88 = vadd.f32 %v70, %v71
    %89 = vadd.xlane.f32.xlu0 %v88
    %v90 = vpop.xlane.xlu0 %89
    %v91 = vadd.f32 %v72, %v73
    %92 = vadd.xlane.f32.xlu0 %v91
    %v93 = vpop.xlane.xlu0 %92
    %v94 = vadd.f32 %v74, %v75
    %95 = vadd.xlane.f32.xlu0 %v94
    %v96 = vpop.xlane.xlu0 %95
    %v97 = vadd.f32 %v76, %v77
    %98 = vadd.xlane.f32.xlu0 %v97
    %v99 = vpop.xlane.xlu0 %98
    %v100 = vadd.f32 %v78, %v79
    %101 = vadd.xlane.f32.xlu0 %v100
    %v102 = vpop.xlane.xlu0 %101
    %v103 = vadd.f32 %v80, %v81
    %104 = vadd.xlane.f32.xlu0 %v103
    %v105 = vpop.xlane.xlu0 %104
    %v106 = vadd.f32 %v82, %v83
    %107 = vadd.xlane.f32.xlu0 %v106
    %v108 = vpop.xlane.xlu0 %107
    %v117 = vlaneseq
    %v118 = vand.u32 %v117, 127
    %v119 = vlaneseq
    %v120 = vshrl.u32 %v119, 7
    %v121 = vsub.s32 %v118, %v120
    %v122 = vrot.slane %v87, %v121
    %v123 = vadd.s32 %v118, 4294967288
    %v124 = vlaneseq
    %v125 = vshrl.u32 %v124, 7
    %v126 = vsub.s32 %v123, %v125
    %v127 = vrot.slane %v90, %v126
    %vm128 = vcmask 130112
    %v129 = vsel %vm128, %v127, %v122
    %v130 = vadd.s32 %v118, 4294967280
    %v131 = vlaneseq
    %v132 = vshrl.u32 %v131, 7
    %v133 = vsub.s32 %v130, %v132
    %v134 = vrot.slane %v93, %v133
    %vm135 = vcmask 195712
    %v136 = vsel %vm135, %v134, %v129
    %v137 = vadd.s32 %v118, 4294967272
    %v138 = vlaneseq
    %v139 = vshrl.u32 %v138, 7
    %v140 = vsub.s32 %v137, %v139
    %v141 = vrot.slane %v96, %v140
    %vm142 = vcmask 261312
    %v143 = vsel %vm142, %v141, %v136
    %v144 = vlaneseq
    %v145 = vshrl.u32 %v144, 7
    %v146 = vsub.s32 %v118, %v145
    %v147 = vrot.slane %v99, %v146
    %v148 = vlaneseq
    %v149 = vshrl.u32 %v148, 7
    %v150 = vsub.s32 %v123, %v149
    %v151 = vrot.slane %v102, %v150
    %v152 = vsel %vm128, %v151, %v147
    %v153 = vlaneseq
    %v154 = vshrl.u32 %v153, 7
    %v155 = vsub.s32 %v130, %v154
    %v156 = vrot.slane %v105, %v155
    %v157 = vsel %vm135, %v156, %v152
    %v158 = vlaneseq
    %v159 = vshrl.u32 %v158, 7
    %v160 = vsub.s32 %v137, %v159
    %v161 = vrot.slane %v108, %v160
    %v162 = vsel %vm142, %v161, %v157
    %vm163 = vcmask 1041409
    %v164 = vsel %vm163, %v162, %v143
    %v166 = vadd.f32 %v84, %v164
    %vm167 = vcmask 254976
    %168 = vst.msk [vmem:[#allocation2] sm:$0x3] %vm167, %v166
    // Predicated region
    $region38: #{tpu_custom_call.1} parent=1 // pred_check
      %p169 = pneg %p62
    $region39: #{tpu_custom_call.1} parent=1 // pred_check_branch
      %171 = sbr.rel (%p169) target = $region41
    $region40: #{tpu_custom_call.1} parent=1 // pred_region
      %v172 = vld [vmem:[#allocation2] sm:$0x3]
      %v173 = vmul.f32 %v172, 0.00390625
      %v174 = vld [vmem:[#allocation6] sm:$0xff]
      %v175 = vld [vmem:[#allocation6 + $0x8] sm:$0xff]
      %v176 = vld [vmem:[#allocation6 + $0x10] sm:$0xff]
      %v177 = vld [vmem:[#allocation6 + $0x18] sm:$0xff]
      %v178 = vld [vmem:[%s2] sm:$0x1]
      %v180 = vlaneseq
      %v181 = vshrl.u32 %v180, 7
      %v182 = vsub.s32 0, %v181
      %v183 = vrot.slane %v178, %v182
      %vm185 = vcmask 261120
      %v187 = vsel %vm185, %v173, 0
      %189 = vmatprep.subr.mxu0 0.0
      %190 = vmatpush1.msra.mxu0 %v174
      %191 = vmatprep.subr.mxu0 0.0
      %192 = vmatpush1.msra.mxu0 %v175
      %193 = vmatprep.subr.mxu0 0.0
      %194 = vmatpush1.msra.mxu0 %v176
      %195 = vmatprep.subr.mxu0 0.0
      %196 = vmatpush1.msra.mxu0 %v177
      %197 = vmatprep.subr.mxu0 0.0
      %198 = vmatpush1.msra.mxu0 0.0
      %199 = vmatprep.subr.mxu0 0.0
      %200 = vmatpush1.msra.mxu0 0.0
      %201 = vmatprep.subr.mxu0 0.0
      %202 = vmatpush1.msra.mxu0 0.0
      %203 = vmatprep.subr.mxu0 0.0
      %204 = vmatpush1.msra.mxu0 0.0
      %205 = vmatprep.subr.mxu0 0.0
      %206 = vmatpush1.msra.mxu0 0.0
      %207 = vmatprep.subr.mxu0 0.0
      %208 = vmatpush1.msra.mxu0 0.0
      %209 = vmatprep.subr.mxu0 0.0
      %210 = vmatpush1.msra.mxu0 0.0
      %211 = vmatprep.subr.mxu0 0.0
      %212 = vmatpush1.msra.mxu0 0.0
      %213 = vmatprep.subr.mxu0 0.0
      %214 = vmatpush1.msra.mxu0 0.0
      %215 = vmatprep.subr.mxu0 0.0
      %216 = vmatpush1.msra.mxu0 0.0
      %217 = vmatprep.subr.mxu0 0.0
      %218 = vmatpush1.msra.mxu0 0.0
      %219 = vmatprep.subr.mxu0 0.0
      %220 = vmatpush1.msra.mxu0 0.0
      %221 = vmatprep.subr.mxu0 0.0
      %222 = vmatpush1.msra.mxu0 0.0
      %223 = vmatprep.subr.mxu0 0.0
      %224 = vmatpush1.msra.mxu0 0.0
      %225 = vmatprep.subr.mxu0 0.0
      %226 = vmatpush1.msra.mxu0 0.0
      %227 = vmatprep.subr.mxu0 0.0
      %228 = vmatpush1.msra.mxu0 0.0
      %229 = vmatprep.subr.mxu0 0.0
      %230 = vmatpush1.msra.mxu0 0.0
      %231 = vmatprep.subr.mxu0 0.0
      %232 = vmatpush1.msra.mxu0 0.0
      %233 = vmatprep.subr.mxu0 0.0
      %234 = vmatpush1.msra.mxu0 0.0
      %235 = vmatprep.subr.mxu0 0.0
      %236 = vmatpush1.msra.mxu0 0.0
      %237 = vmatprep.subr.mxu0 0.0
      %238 = vmatpush1.msra.mxu0 0.0
      %239 = vmatprep.subr.mxu0 0.0
      %240 = vmatpush1.msra.mxu0 0.0
      %241 = vmatprep.subr.mxu0 0.0
      %242 = vmatpush1.msra.mxu0 0.0
      %243 = vmatprep.subr.mxu0 0.0
      %244 = vmatpush1.msra.mxu0 0.0
      %245 = vmatprep.subr.mxu0 0.0
      %246 = vmatpush1.msra.mxu0 0.0
      %247 = vmatprep.subr.mxu0 0.0
      %248 = vmatpush1.msra.mxu0 0.0
      %249 = vmatprep.subr.mxu0 0.0
      %250 = vmatpush1.msra.mxu0 0.0
      %251 = vmatprep.subr.mxu0 0.0
      %252 = vmatpush1.msra.mxu0 0.0
      %253 = vmatprep.mubr.f32.mxu0 0.0
      %254 = vmatmul.mubr.f32.gmra.mrb[0].mxu0 %v187
      %v255 = vpop.f32.mrb[0].mxu0
      %v256 = vadd.f32 %v183, %v255
      %v257 = vpop.f32.mrb[0].mxu0
      %258 = vdwg.mxu0
      %v259 = vmax.f32 %v256, 0.0
      %v260 = vld [vmem:[#allocation8] sm:$0xff]
      %v261 = vld [vmem:[#allocation8 + $0x8] sm:$0xff]
      %v262 = vld [vmem:[#allocation8 + $0x10] sm:$0xff]
      %v263 = vld [vmem:[#allocation8 + $0x18] sm:$0xff]
      %v264 = vld [vmem:[#allocation8 + $0x20] sm:$0xff]
      %v265 = vld [vmem:[#allocation8 + $0x28] sm:$0xff]
      %v266 = vld [vmem:[#allocation8 + $0x30] sm:$0xff]
      %v267 = vld [vmem:[#allocation8 + $0x38] sm:$0xff]
      %v268 = vld [vmem:[%s4] sm:$0x1]
      %v270 = vlaneseq
      %v271 = vshrl.u32 %v270, 7
      %v272 = vsub.s32 0, %v271
      %v273 = vrot.slane %v268, %v272
      %vm275 = vcmask 523264
      %v277 = vsel %vm275, %v259, 0
      %279 = vmatprep.subr.mxu0 0.0
      %280 = vmatpush1.msra.mxu0 %v260
      %281 = vmatprep.subr.mxu0 0.0
      %282 = vmatpush1.msra.mxu0 %v261
      %283 = vmatprep.subr.mxu0 0.0
      %284 = vmatpush1.msra.mxu0 %v262
      %285 = vmatprep.subr.mxu0 0.0
      %286 = vmatpush1.msra.mxu0 %v263
      %287 = vmatprep.subr.mxu0 0.0
      %288 = vmatpush1.msra.mxu0 %v264
      %289 = vmatprep.subr.mxu0 0.0
      %290 = vmatpush1.msra.mxu0 %v265
      %291 = vmatprep.subr.mxu0 0.0
      %292 = vmatpush1.msra.mxu0 %v266
      %293 = vmatprep.subr.mxu0 0.0
      %294 = vmatpush1.msra.mxu0 %v267
      %295 = vmatprep.subr.mxu0 0.0
      %296 = vmatpush1.msra.mxu0 0.0
      %297 = vmatprep.subr.mxu0 0.0
      %298 = vmatpush1.msra.mxu0 0.0
      %299 = vmatprep.subr.mxu0 0.0
      %300 = vmatpush1.msra.mxu0 0.0
      %301 = vmatprep.subr.mxu0 0.0
      %302 = vmatpush1.msra.mxu0 0.0
      %303 = vmatprep.subr.mxu0 0.0
      %304 = vmatpush1.msra.mxu0 0.0
      %305 = vmatprep.subr.mxu0 0.0
      %306 = vmatpush1.msra.mxu0 0.0
      %307 = vmatprep.subr.mxu0 0.0
      %308 = vmatpush1.msra.mxu0 0.0
      %309 = vmatprep.subr.mxu0 0.0
      %310 = vmatpush1.msra.mxu0 0.0
      %311 = vmatprep.subr.mxu0 0.0
      %312 = vmatpush1.msra.mxu0 0.0
      %313 = vmatprep.subr.mxu0 0.0
      %314 = vmatpush1.msra.mxu0 0.0
      %315 = vmatprep.subr.mxu0 0.0
      %316 = vmatpush1.msra.mxu0 0.0
      %317 = vmatprep.subr.mxu0 0.0
      %318 = vmatpush1.msra.mxu0 0.0
      %319 = vmatprep.subr.mxu0 0.0
      %320 = vmatpush1.msra.mxu0 0.0
      %321 = vmatprep.subr.mxu0 0.0
      %322 = vmatpush1.msra.mxu0 0.0
      %323 = vmatprep.subr.mxu0 0.0
      %324 = vmatpush1.msra.mxu0 0.0
      %325 = vmatprep.subr.mxu0 0.0
      %326 = vmatpush1.msra.mxu0 0.0
      %327 = vmatprep.subr.mxu0 0.0
      %328 = vmatpush1.msra.mxu0 0.0
      %329 = vmatprep.subr.mxu0 0.0
      %330 = vmatpush1.msra.mxu0 0.0
      %331 = vmatprep.subr.mxu0 0.0
      %332 = vmatpush1.msra.mxu0 0.0
      %333 = vmatprep.subr.mxu0 0.0
      %334 = vmatpush1.msra.mxu0 0.0
      %335 = vmatprep.subr.mxu0 0.0
      %336 = vmatpush1.msra.mxu0 0.0
      %337 = vmatprep.subr.mxu0 0.0
      %338 = vmatpush1.msra.mxu0 0.0
      %339 = vmatprep.subr.mxu0 0.0
      %340 = vmatpush1.msra.mxu0 0.0
      %341 = vmatprep.subr.mxu0 0.0
      %342 = vmatpush1.msra.mxu0 0.0
      %343 = vmatprep.mubr.f32.mxu0 0.0
      %344 = vmatmul.mubr.f32.gmra.mrb[0].mxu0 %v277
      %v345 = vpop.f32.mrb[0].mxu0
      %v346 = vadd.f32 %v273, %v345
      %v347 = vpop.f32.mrb[0].mxu0
      %348 = vdwg.mxu0
      %349 = vst [vmem:[#allocation9] sm:$0x3] %v346
    $region41: #{tpu_custom_call.1} parent=1 // pred_fallthru
      _
    // Predicated region
    $region42: #{tpu_custom_call.1} parent=1 // pred_check
      _
    $region43: #{tpu_custom_call.1} parent=1 // pred_check_branch
      %351 = sbr.rel (0) target = $region45
    $region44: #{tpu_custom_call.1} parent=1 // pred_region
      %s353 = ssub.s32 32, 32
      %354 = vsyncadd [#allocation5], %s353
      %s356 = sshll.u32 [#allocation9], 4
      %s357 = int_to_ptr.vmem [resolvable:$true] %s356
      %359 = dma.vmem_to_hbm [thread:$0]  %s357, 32, %s5, [#allocation5]
    $region45: #{tpu_custom_call.1} parent=1 // pred_fallthru
      _
    // Predicated region
    $region46: #{tpu_custom_call.1} parent=1 // pred_check
      _
    $region47: #{tpu_custom_call.1} parent=1 // pred_check_branch
      %361 = sbr.rel (0) target = $region49
    $region48: #{tpu_custom_call.1} parent=1 // pred_region
      %362 = dma.done [#allocation5], 32
    $region49: #{tpu_custom_call.1} parent=1 // pred_fallthru
      _
    %363 = vsyncpa [#allocation4], 1
    %364 = vsyncpa [#allocation7], 1
    %365 = vsyncpa [#allocation5], 1

</llo_original>
